<compile_context>
chip_gen: v7x
topology: tpu7x:2x2x1
jax: 0.10.0
libtpu: 0.0.40
codegen_flags: <defaults>
</compile_context>

<pallas_src>
import functools

import jax
import jax.numpy as jnp
from jax.experimental import pallas as pl
from jax.experimental.pallas import tpu as pltpu


def _choose_block_s(S: int, E: int, itemsize: int,
                    target_bytes: int = 1 << 20, max_rows: int = 1024) -> int:
    """Sequence-tile size: <= ~1 MiB per (TS, E) block, TS a multiple of 8 (or the
    full S), capped at 1024 rows.  Keeps double-buffered working sets small enough
    for v7x's 64 MiB VMEM while amortizing per-grid-step overhead."""
    rows = target_bytes // max(1, E * itemsize)
    rows = max(8, min(rows, max_rows))
    if rows >= S:
        return S
    return (rows // 8) * 8


def _eval_kernel(x_ref, pos_ref, o_ref):
    # out = x + pos ; pos block is (1, TS, 1) and broadcasts along the lane (E) axis.
    o_ref[...] = (x_ref[...] + pos_ref[...].astype(x_ref.dtype)).astype(o_ref.dtype)


def _make_train_kernel(dropout_p: float):
    # Integer-space keep test:  keep  <=>  bits >= p * 2^32    (P(keep) = 1 - p).
    threshold = min(max(int(dropout_p * 4294967296.0), 0), 4294967295)
    scale = 1.0 / (1.0 - dropout_p)

    def kernel(x_ref, pos_ref, bits_ref, o_ref):
        val = x_ref[...] + pos_ref[...].astype(x_ref.dtype)   # stays in x's dtype
        keep = bits_ref[...] >= jnp.uint32(threshold)
        o_ref[...] = jnp.where(keep, val * scale, 0.0).astype(o_ref.dtype)

    return kernel


@functools.partial(jax.jit, static_argnames=("dropout_p", "training"))
def positional_encoding(x, pos_embedding, rng_key=None, *, dropout_p: float,
                        training: bool = False):
    """x: (B, S, E); pos_embedding: (1, S, 1) trainable parameter; returns (B, S, E)."""
    B, S, E = x.shape
    use_dropout = bool(training) and dropout_p > 0.0
    if use_dropout and dropout_p >= 1.0:          # degenerate p=1 case
        return jnp.zeros_like(x)

    TS = _choose_block_s(S, E, x.dtype.itemsize)
    grid = (B, pl.cdiv(S, TS))

    x_spec = pl.BlockSpec((1, TS, E), lambda b, s: (b, s, 0))
    pos_spec = pl.BlockSpec((1, TS, 1), lambda b, s: (0, s, 0))
    out_spec = pl.BlockSpec((1, TS, E), lambda b, s: (b, s, 0))

    if use_dropout:
        if rng_key is None:
            raise ValueError("training-mode dropout requires rng_key")
        # TODO(synk): bit-for-bit parity with torch.nn.Dropout's RNG stream is not
        # reproducible; statistics (keep prob, 1/(1-p) rescale) match.
        bits = jax.random.bits(rng_key, (B, S, E), dtype=jnp.uint32)
        kernel = _make_train_kernel(float(dropout_p))
        in_specs = [x_spec, pos_spec,
                    pl.BlockSpec((1, TS, E), lambda b, s: (b, s, 0))]
        operands = (x, pos_embedding, bits)
    else:
        kernel = _eval_kernel
        in_specs = [x_spec, pos_spec]
        operands = (x, pos_embedding)

    return pl.pallas_call(
        kernel,
        out_shape=jax.ShapeDtypeStruct((B, S, E), x.dtype),
        grid=grid,
        in_specs=in_specs,
        out_specs=out_spec,
        compiler_params=pltpu.CompilerParams(
            dimension_semantics=("parallel", "parallel")),
    )(*operands)


def init_pos_embedding(seq_length: int, emb_dim: int, dtype=jnp.float32):
    """torch.arange(1, seq_length + 1)[None, :, None] / emb_dim  -> shape (1, S, 1)."""
    return (jnp.arange(1, seq_length + 1, dtype=dtype) / emb_dim)[None, :, None]


if __name__ == "__main__":
    # Module defaults: emb_dim=128, seq_length=60; small batch for the demo.
    B, S, E = 2, 60, 128
    dropout_p = 0.1

    key = jax.random.PRNGKey(0)
    kx, kd = jax.random.split(key)
    x = jax.random.normal(kx, (B, S, E), dtype=jnp.float32)
    pos = init_pos_embedding(S, E)

    # Eval mode: dropout is identity -> deterministic check vs pure-JAX reference.
    out = positional_encoding(x, pos, dropout_p=dropout_p, training=False)
    out = jax.block_until_ready(out)
    ref = x + pos
    assert out.shape == (B, S, E)
    assert jnp.allclose(out, ref, atol=1e-6), "eval-mode mismatch vs reference"

    # Training mode: mask + 1/(1-p) rescale (bits generated with jax.random, so this
    # path also runs in interpret mode / on TPU without the pltpu PRNG).
    out_train = positional_encoding(x, pos, rng_key=kd,
                                    dropout_p=dropout_p, training=True)
    out_train = jax.block_until_ready(out_train)
    scale = 1.0 / (1.0 - dropout_p)
    kept_err = jnp.where(out_train != 0, jnp.abs(out_train - ref * scale), 0.0)
    assert float(kept_err.max()) < 1e-5, "training-mode kept values mismatch"

    print("KERNEL_OK")
</pallas_src>

<mosaic_0001>
module attributes {stable_mosaic.version = 11 : i64} {
  func.func @_eval_kernel(%arg0: i32, %arg1: i32, %arg2: memref<1x60x128xf32, #tpu.memory_space<vmem>>, %arg3: memref<1x60x1xf32, #tpu.memory_space<vmem>>, %arg4: memref<1x60x128xf32, #tpu.memory_space<vmem>>) attributes {dimension_semantics = [#tpu.dimension_semantics<parallel>, #tpu.dimension_semantics<parallel>], iteration_bounds = array<i64: 2, 1>, scalar_prefetch = 0 : i64, scratch_operands = 0 : i64, tpu.core_type = #tpu.core_type<tc>, window_params = [{transform_indices = @transform_0, window_bounds = array<i64: 1, 60, 128>}, {transform_indices = @transform_1, window_bounds = array<i64: 1, 60, 1>}, {transform_indices = @transform_2, window_bounds = array<i64: 1, 60, 128>}]} {
    %c0 = arith.constant 0 : index
    %c0_0 = arith.constant 0 : index
    %c0_1 = arith.constant 0 : index
    %0 = vector.load %arg2[%c0, %c0_0, %c0_1] : memref<1x60x128xf32, #tpu.memory_space<vmem>>, vector<1x60x128xf32>
    %c0_2 = arith.constant 0 : index
    %c0_3 = arith.constant 0 : index
    %c0_4 = arith.constant 0 : index
    %1 = vector.load %arg3[%c0_2, %c0_3, %c0_4] : memref<1x60x1xf32, #tpu.memory_space<vmem>>, vector<1x60x1xf32>
    %2 = vector.broadcast %1 : vector<1x60x1xf32> to vector<1x60x128xf32>
    %3 = arith.addf %0, %2 : vector<1x60x128xf32>
    %c0_5 = arith.constant 0 : index
    %c0_6 = arith.constant 0 : index
    %c0_7 = arith.constant 0 : index
    %4 = vector.load %arg4[%c0_5, %c0_6, %c0_7] : memref<1x60x128xf32, #tpu.memory_space<vmem>>, vector<1x60x128xf32>
    tpu.vector_store %arg4[%c0_5, %c0_6, %c0_7], %3 {strides = array<i32>} : memref<1x60x128xf32, #tpu.memory_space<vmem>>, vector<1x60x128xf32>,
    return
  }
  func.func @transform_0(%arg0: i32, %arg1: i32) -> (i32, i32, i32) {
    %c0_i32 = arith.constant 0 : i32
    %c0_i32_0 = arith.constant 0 : i32
    return %arg0, %arg1, %c0_i32 : i32, i32, i32
  }
  func.func @transform_1(%arg0: i32, %arg1: i32) -> (i32, i32, i32) {
    %c0_i32 = arith.constant 0 : i32
    %c0_i32_0 = arith.constant 0 : i32
    %c0_i32_1 = arith.constant 0 : i32
    return %c0_i32, %arg1, %c0_i32_0 : i32, i32, i32
  }
  func.func @transform_2(%arg0: i32, %arg1: i32) -> (i32, i32, i32) {
    %c0_i32 = arith.constant 0 : i32
    %c0_i32_0 = arith.constant 0 : i32
    return %arg0, %arg1, %c0_i32 : i32, i32, i32
  }
}

</mosaic_0001>

<llo_original>
// kernel: positional_encoding.1
$region0: #{positional_encoding.1}
  #allocation0 [shape = 'u32[]', space=smem, size = 0x4, offset = 0x4, fixed_abs, tag = 'smem constant byte address 0x4 - core index']
  #allocation1 [shape = 'u32[144,128]{1,0:T(1,128)}', space=vmem, size = 0x12000, scoped, tag = 'internal scratch']
  %s0 = inlined_call_operand.vmem [shape: f32[2,60,128], index: 0, kind: input, shape index: {}]
  %s1 = inlined_call_operand.vmem [shape: f32[1,60,1], index: 1, kind: input, shape index: {}]
  %s2 = inlined_call_operand.vmem [shape: f32[2,60,128], index: 2, kind: output, shape index: {}]
  %s3 = sld [smem:[#allocation0]]
  $region41: #{positional_encoding.1} parent=0
    _
  %s5 = ssub.s32 1, %s3
  %s6 = scalar_select 0, %s5, %s3
  loop: start=0, step=1, limit=4
  $region2: #{positional_encoding.1} parent=0 // loop_pre_header
    _
  $region3: #{positional_encoding.1} parent=0 // loop_header
    %s8 = sphi 0, %s12
    %p9 = scmp.ge.s32.totalorder %s8, 4
    %s15 = sphi 0, %s27
    %s16 = sphi 0, %s23
    %s17 = sphi 0, %s15
    %s18 = sphi 0, %s16
    %s19 = sphi 0, %s17
    %s20 = sphi 0, %s18
    %s32 = sphi 0, %s34
    %s35 = sphi 0, %s32
    %s36 = sphi 0, %s35
    %s52 = sphi 0, %s36
    %s58 = sphi 0, %s60
    %s61 = sphi 0, %s58
    %s62 = sphi 0, %s61
    %s78 = sphi 0, %s62
    %s86 = sphi 0, %s88
    %s89 = sphi 0, %s86
    %s90 = sphi 0, %s89
    %s106 = sphi 0, %s90
  $region4: #{positional_encoding.1} parent=0 // loop_header_branch
    %11 = sbr.rel (%p9) target = $region8
  $region5: #{positional_encoding.1} parent=0 // loop_body
    %s13 = ssub.s32 %s8, 1
    %s14 = ssub.s32 %s8, 2
    %s21 = sadd.s32 1, %s16
    %p22 = scmp.ge.s32.totalorder %s21, 1
    %s23 = scalar_select %p22, 0, %s21
    %s24 = sadd.s32 1, %s15
    %s25 = scalar_select %p22, %s24, %s15
    %p26 = scmp.ge.s32.totalorder %s25, 2
    %s27 = scalar_select %p26, 0, %s25
    %s28 = ssub.s32 %s15, %s27
    %s29 = ssub.s32 %s16, %s23
    %s30 = sor.u32 %s28, %s29
    %p31 = scmp.eq.s32.totalorder %s30, 0
    %s33 = sadd.s32 %s32, 1
    %s34 = scalar_select %p31, %s32, %s33
    %p37 = pneg %p31
    %p38 = scmp.eq.s32.totalorder %s8, 1
    %p39 = por %p37, %p38
    %p40 = scmp.ne.s32.totalorder %s32, %s35
    %p41 = scmp.eq.s32.totalorder %s8, 0
    %p42 = por %p40, %p41
    %p43 = scmp.ne.s32.totalorder %s32, %s35
    %p44 = scmp.eq.s32.totalorder %s13, 1
    %p45 = por %p43, %p44
    %p46 = scmp.ne.s32.totalorder %s35, %s36
    %p47 = scmp.eq.s32.totalorder %s13, 0
    %p48 = por %p46, %p47
    %p49 = scmp.ne.s32.totalorder %s35, %s36
    %p50 = scmp.eq.s32.totalorder %s14, 1
    %p51 = por %p49, %p50
    %p53 = scmp.ne.s32.totalorder %s36, %s52
    %p54 = scmp.eq.s32.totalorder %s14, 0
    %p55 = por %p53, %p54
    %s56 = ssub.s32 %s16, %s23
    %p57 = scmp.eq.s32.totalorder %s56, 0
    %s59 = sadd.s32 %s58, 1
    %s60 = scalar_select %p57, %s58, %s59
    %p63 = pneg %p57
    %p64 = scmp.eq.s32.totalorder %s8, 1
    %p65 = por %p63, %p64
    %p66 = scmp.ne.s32.totalorder %s58, %s61
    %p67 = scmp.eq.s32.totalorder %s8, 0
    %p68 = por %p66, %p67
    %p69 = scmp.ne.s32.totalorder %s58, %s61
    %p70 = scmp.eq.s32.totalorder %s13, 1
    %p71 = por %p69, %p70
    %p72 = scmp.ne.s32.totalorder %s61, %s62
    %p73 = scmp.eq.s32.totalorder %s13, 0
    %p74 = por %p72, %p73
    %p75 = scmp.ne.s32.totalorder %s61, %s62
    %p76 = scmp.eq.s32.totalorder %s14, 1
    %p77 = por %p75, %p76
    %p79 = scmp.ne.s32.totalorder %s62, %s78
    %p80 = scmp.eq.s32.totalorder %s14, 0
    %p81 = por %p79, %p80
    %s82 = ssub.s32 %s15, %s27
    %s83 = ssub.s32 %s16, %s23
    %s84 = sor.u32 %s82, %s83
    %p85 = scmp.eq.s32.totalorder %s84, 0
    %s87 = sadd.s32 %s86, 1
    %s88 = scalar_select %p85, %s86, %s87
    %p91 = pneg %p85
    %p92 = scmp.eq.s32.totalorder %s8, 1
    %p93 = por %p91, %p92
    %p94 = scmp.ne.s32.totalorder %s86, %s89
    %p95 = scmp.eq.s32.totalorder %s8, 0
    %p96 = por %p94, %p95
    %p97 = scmp.ne.s32.totalorder %s86, %s89
    %p98 = scmp.eq.s32.totalorder %s13, 1
    %p99 = por %p97, %p98
    %p100 = scmp.ne.s32.totalorder %s89, %s90
    %p101 = scmp.eq.s32.totalorder %s13, 0
    %p102 = por %p100, %p101
    %p103 = scmp.ne.s32.totalorder %s89, %s90
    %p104 = scmp.eq.s32.totalorder %s14, 1
    %p105 = por %p103, %p104
    %p107 = scmp.ne.s32.totalorder %s90, %s106
    %p108 = scmp.eq.s32.totalorder %s14, 0
    %p109 = por %p107, %p108
    %p110 = scmp.le.s32.totalorder 1, %s8
    %p111 = scmp.lt.s32.totalorder %s8, 3
    %p112 = pnand %p110, %p111
    %p113 = pneg %p112
    // Predicated region
    $region9: #{positional_encoding.1} parent=5 // pred_check
      _
    $region10: #{positional_encoding.1} parent=5 // pred_check_branch
      %115 = sbr.rel (%p112) target = $region12
    $region11: #{positional_encoding.1} parent=5 // pred_region
      %s116 = ssub.s32 %s8, 1
      // Predicated region
      $region13: #{positional_encoding.1} parent=11 // pred_check
        %p117 = pneg %p74
      $region14: #{positional_encoding.1} parent=11 // pred_check_branch
        %119 = sbr.rel (%p117) target = $region16
      $region15: #{positional_encoding.1} parent=11 // pred_region
        %s120 = smul.u32 8, %s18
        %p121 = scmp.lt.s32.totalorder %s120, 7
        %s122 = scalar_select %p121, %s120, 7
        %s123 = smul.addr %s122, 8
        %s124 = scalar_lea.vmem %s1, %s123
        %s125 = smul.u32 8, %s18
      $region16: #{positional_encoding.1} parent=11 // pred_fallthru
        _
    $region12: #{positional_encoding.1} parent=5 // pred_fallthru
      _
    %p126 = scmp.lt.s32.totalorder %s8, 2
    // Predicated region
    $region17: #{positional_encoding.1} parent=5 // pred_check
      %p127 = pneg %p126
    $region18: #{positional_encoding.1} parent=5 // pred_check_branch
      %129 = sbr.rel (%p127) target = $region20
    $region19: #{positional_encoding.1} parent=5 // pred_region
      // Predicated region
      $region21: #{positional_encoding.1} parent=19 // pred_check
        %p130 = pneg %p42
      $region22: #{positional_encoding.1} parent=19 // pred_check_branch
        %132 = sbr.rel (%p130) target = $region24
      $region23: #{positional_encoding.1} parent=19 // pred_region
        %s133 = smul.u32 8, %s16
        %p134 = scmp.lt.s32.totalorder %s15, 1
        %s135 = scalar_select %p134, %s15, 1
        %p136 = scmp.lt.s32.totalorder %s133, 7
        %s137 = scalar_select %p136, %s133, 7
        %s138 = smul.addr %s135, 8
        %s139 = sadd.s32 %s137, %s138
        %s140 = smul.addr %s139, 8
        %s141 = scalar_lea.vmem %s0, %s140
        %s142 = smul.u32 8, %s16
      $region24: #{positional_encoding.1} parent=19 // pred_fallthru
        _
    $region20: #{positional_encoding.1} parent=5 // pred_fallthru
      _
    %p143 = scmp.le.s32.totalorder 1, %s8
    %p144 = scmp.lt.s32.totalorder %s8, 3
    %p145 = pnand %p143, %p144
    %p146 = pneg %p145
    // Predicated region
    $region25: #{positional_encoding.1} parent=5 // pred_check
      _
    $region26: #{positional_encoding.1} parent=5 // pred_check_branch
      %148 = sbr.rel (%p145) target = $region28
    $region27: #{positional_encoding.1} parent=5 // pred_region
      %s149 = ssub.s32 %s8, 1
      %s150 = smul.u32 8, %s18
      %p151 = scmp.lt.s32.totalorder %s17, 1
      %s152 = scalar_select %p151, %s17, 1
      %p153 = scmp.lt.s32.totalorder %s150, 7
      %s154 = scalar_select %p153, %s150, 7
      %s155 = smul.addr %s152, 8
      %s156 = sadd.s32 %s154, %s155
      %s157 = smul.addr %s156, 8
      %s158 = scalar_lea.vmem %s0, %s157
      %p159 = pneg %p48
      %p160 = pneg %p45
      %s161 = smul.u32 8, %s18
      %p162 = scmp.lt.s32.totalorder %s161, 7
      %s163 = scalar_select %p162, %s161, 7
      %s164 = smul.addr %s163, 8
      %s165 = scalar_lea.vmem %s1, %s164
      %p166 = pneg %p74
      %p167 = pneg %p71
      %p168 = pneg %p102
      %p169 = pneg %p99
      %s170 = smul.u32 8, %s18
      %p171 = scmp.lt.s32.totalorder %s17, 1
      %s172 = scalar_select %p171, %s17, 1
      %p173 = scmp.lt.s32.totalorder %s170, 7
      %s174 = scalar_select %p173, %s170, 7
      %s175 = smul.addr %s172, 8
      %s176 = sadd.s32 %s174, %s175
      %s177 = smul.addr %s176, 8
      %s178 = scalar_lea.vmem %s2, %s177
      %s179 = smul.u32 8, %s18
      %p180 = scmp.lt.s32.totalorder %s17, 1
      %s181 = scalar_select %p180, %s17, 1
      %p182 = scmp.lt.s32.totalorder %s179, 7
      %s183 = scalar_select %p182, %s179, 7
      %s184 = smul.addr %s181, 8
      %s185 = sadd.s32 %s183, %s184
      %s186 = smul.addr %s185, 8
      %s187 = scalar_lea.vmem %s0, %s186
      %s188 = smul.u32 8, %s18
      %s189 = smul.u32 8, %s18
      %p190 = scmp.lt.s32.totalorder %s189, 7
      %s191 = scalar_select %p190, %s189, 7
      %s192 = smul.addr %s191, 8
      %s193 = scalar_lea.vmem %s1, %s192
      %s194 = smul.u32 8, %s18
      %s195 = smul.u32 8, %s18
      %p196 = scmp.lt.s32.totalorder %s17, 1
      %s197 = scalar_select %p196, %s17, 1
      %p198 = scmp.lt.s32.totalorder %s195, 7
      %s199 = scalar_select %p198, %s195, 7
      %s200 = smul.addr %s197, 8
      %s201 = sadd.s32 %s199, %s200
      %s202 = smul.addr %s201, 8
      %s203 = scalar_lea.vmem %s2, %s202
      %s204 = smul.u32 8, %s18
      %v205 = vld [vmem:[%s187] sm:$0xff]
      %v206 = vld [vmem:[%s187 + $0x8] sm:$0xff]
      %v207 = vld [vmem:[%s187 + $0x10] sm:$0xff]
      %v208 = vld [vmem:[%s187 + $0x18] sm:$0xff]
      %v209 = vld [vmem:[%s187 + $0x20] sm:$0xff]
      %v210 = vld [vmem:[%s187 + $0x28] sm:$0xff]
      %v211 = vld [vmem:[%s187 + $0x30] sm:$0xff]
      %v212 = vld [vmem:[%s187 + $0x38] sm:$0xf]
      %v213 = vld [vmem:[%s193] sm:$0xff]
      %v214 = vld [vmem:[%s193 + $0x8] sm:$0xff]
      %v215 = vld [vmem:[%s193 + $0x10] sm:$0xff]
      %v216 = vld [vmem:[%s193 + $0x18] sm:$0xff]
      %v217 = vld [vmem:[%s193 + $0x20] sm:$0xff]
      %v218 = vld [vmem:[%s193 + $0x28] sm:$0xff]
      %v219 = vld [vmem:[%s193 + $0x30] sm:$0xff]
      %v220 = vld [vmem:[%s193 + $0x38] sm:$0xf]
      %222 = vset.pattern.permute.xlu0 0
      %223 = vperm.xlu0 %222, %v213
      %v224 = vpop.permute.xlu0 %223
      %227 = vset.pattern.permute.xlu0 0
      %228 = vperm.xlu0 %227, %v214
      %v229 = vpop.permute.xlu0 %228
      %232 = vset.pattern.permute.xlu0 0
      %233 = vperm.xlu0 %232, %v215
      %v234 = vpop.permute.xlu0 %233
      %237 = vset.pattern.permute.xlu0 0
      %238 = vperm.xlu0 %237, %v216
      %v239 = vpop.permute.xlu0 %238
      %242 = vset.pattern.permute.xlu0 0
      %243 = vperm.xlu0 %242, %v217
      %v244 = vpop.permute.xlu0 %243
      %247 = vset.pattern.permute.xlu0 0
      %248 = vperm.xlu0 %247, %v218
      %v249 = vpop.permute.xlu0 %248
      %252 = vset.pattern.permute.xlu0 0
      %253 = vperm.xlu0 %252, %v219
      %v254 = vpop.permute.xlu0 %253
      %257 = vset.pattern.permute.xlu0 0
      %258 = vperm.xlu0 %257, %v220
      %v259 = vpop.permute.xlu0 %258
      %v261 = vadd.f32 %v205, %v224
      %v262 = vadd.f32 %v206, %v229
      %v263 = vadd.f32 %v207, %v234
      %v264 = vadd.f32 %v208, %v239
      %v265 = vadd.f32 %v209, %v244
      %v266 = vadd.f32 %v210, %v249
      %v267 = vadd.f32 %v211, %v254
      %v268 = vadd.f32 %v212, %v259
      %269 = vst [vmem:[%s203] sm:$0xff] %v261
      %270 = vst [vmem:[%s203 + $0x8] sm:$0xff] %v262
      %271 = vst [vmem:[%s203 + $0x10] sm:$0xff] %v263
      %272 = vst [vmem:[%s203 + $0x18] sm:$0xff] %v264
      %273 = vst [vmem:[%s203 + $0x20] sm:$0xff] %v265
      %274 = vst [vmem:[%s203 + $0x28] sm:$0xff] %v266
      %275 = vst [vmem:[%s203 + $0x30] sm:$0xff] %v267
      %276 = vst [vmem:[%s203 + $0x38] sm:$0xf] %v268
      %s277 = smul.u32 8, %s18
      %p278 = scmp.lt.s32.totalorder %s17, 1
      %s279 = scalar_select %p278, %s17, 1
      %p280 = scmp.lt.s32.totalorder %s277, 7
      %s281 = scalar_select %p280, %s277, 7
      %s282 = smul.addr %s279, 8
      %s283 = sadd.s32 %s281, %s282
      %s284 = smul.addr %s283, 8
      %s285 = scalar_lea.vmem %s2, %s284
      // Predicated region
      $region29: #{positional_encoding.1} parent=27 // pred_check
        %p286 = pneg %p99
      $region30: #{positional_encoding.1} parent=27 // pred_check_branch
        %288 = sbr.rel (%p286) target = $region32
      $region31: #{positional_encoding.1} parent=27 // pred_region
        %s289 = smul.u32 8, %s18
      $region32: #{positional_encoding.1} parent=27 // pred_fallthru
        _
    $region28: #{positional_encoding.1} parent=5 // pred_fallthru
      _
    %p290 = scmp.le.s32.totalorder 2, %s8
    // Predicated region
    $region33: #{positional_encoding.1} parent=5 // pred_check
      %p291 = pneg %p290
    $region34: #{positional_encoding.1} parent=5 // pred_check_branch
      %293 = sbr.rel (%p291) target = $region36
    $region35: #{positional_encoding.1} parent=5 // pred_region
      %s294 = ssub.s32 %s8, 2
      // Predicated region
      $region37: #{positional_encoding.1} parent=35 // pred_check
        %p295 = pneg %p105
      $region38: #{positional_encoding.1} parent=35 // pred_check_branch
        %297 = sbr.rel (%p295) target = $region40
      $region39: #{positional_encoding.1} parent=35 // pred_region
        %s298 = smul.u32 8, %s20
        %p299 = scmp.lt.s32.totalorder %s19, 1
        %s300 = scalar_select %p299, %s19, 1
        %p301 = scmp.lt.s32.totalorder %s298, 7
        %s302 = scalar_select %p301, %s298, 7
        %s303 = smul.addr %s300, 8
        %s304 = sadd.s32 %s302, %s303
        %s305 = smul.addr %s304, 8
        %s306 = scalar_lea.vmem %s2, %s305
      $region40: #{positional_encoding.1} parent=35 // pred_fallthru
        _
    $region36: #{positional_encoding.1} parent=5 // pred_fallthru
      _
  $region6: #{positional_encoding.1} parent=0 // loop_footer
    %s12 = sadd.s32 1, %s8
  $region7: #{positional_encoding.1} parent=0 // loop_footer_branch
    %7 = sbr.rel target = $region3
  $region8: #{positional_encoding.1} parent=0 // loop_exit
    _

</llo_original>
